<compile_context>
chip_gen: v7x
topology: tpu7x:2x2x1
jax: 0.10.0
libtpu: 0.0.40
codegen_flags: <defaults>
</compile_context>

<pallas_src>
import functools

import jax
import jax.numpy as jnp
from jax.experimental import pallas as pl
from jax.experimental.pallas import tpu as pltpu

LATENT = 32     # latent dim of z
HIDDEN = 128    # generator hidden width
OUT = 28 * 28   # 784, flattened MNIST image


def _device_kind():
    try:
        return jax.devices()[0].device_kind.lower()
    except Exception:
        return ""


def _has_bf16_eup():
    # v2-v5 have no bf16 VPU/EUP path; v6e/v7x do.
    kind = _device_kind()
    return not any(tag in kind for tag in ("v2", "v3", "v4", "v5"))


def _default_block_b():
    kind = _device_kind()
    if "v5" in kind:
        return 512       # stays inside v5e's 16 MiB scoped-VMEM default
    return 2048          # v6e/v7x: amortize per-step overhead with bigger tiles


def _generator_kernel(z_ref, w1_ref, b1_ref, w2_ref, b2_ref, o_ref, *, tanh_dtype):
    # layer 1: (TB, LATENT) @ (LATENT, HIDDEN) -- bf16 MXU, f32 accumulate
    z = z_ref[...].astype(jnp.bfloat16)
    h = jnp.dot(z, w1_ref[...], preferred_element_type=jnp.float32)
    h = jnp.maximum(h + b1_ref[...], 0.0)                      # f32 VPU epilogue
    # layer 2: (TB, HIDDEN) @ (HIDDEN, 784) -- bf16 MXU, f32 accumulate
    y = jnp.dot(h.astype(jnp.bfloat16), w2_ref[...],
                preferred_element_type=jnp.float32)
    y = y + b2_ref[...]
    # tanh in bf16 where the EUP supports it (v6e/v7x), f32 otherwise.
    o_ref[...] = jnp.tanh(y.astype(tanh_dtype)).astype(o_ref.dtype)


def prepare_generator_params(w1, b1, w2, b2):
    """One-time weight prep: bf16 matmul operands, f32 biases."""
    return (w1.astype(jnp.bfloat16), b1.astype(jnp.float32),
            w2.astype(jnp.bfloat16), b2.astype(jnp.float32))


def wgan_forward(z, w1, b1, w2, b2, *, block_b=None, out_dtype=jnp.bfloat16):
    """Pallas implementation of WGAN.forward == dcgenerator(z).

    z : (B, LATENT) f32; w1 (LATENT, HIDDEN); b1 (1, HIDDEN);
    w2 (HIDDEN, 784); b2 (1, 784).  Returns (B, 784) in `out_dtype`
    (bf16 by default; tanh output is in [-1, 1] so bf16 is ample for the
    downstream discriminator -- pass out_dtype=jnp.float32 to match PyTorch
    exactly).
    """
    B, latent = z.shape
    hidden, out_f = w2.shape

    # No-ops if prepare_generator_params() was already applied.
    w1 = w1.astype(jnp.bfloat16)
    w2 = w2.astype(jnp.bfloat16)
    b1 = b1.astype(jnp.float32)
    b2 = b2.astype(jnp.float32)

    if block_b is None:
        block_b = _default_block_b()

    # Batch tile: multiple of 8 sublane rows, capped so the grid has >= 2
    # steps whenever B allows (lets "parallel" shard across 2 TensorCores).
    half = (((B + 1) // 2) + 7) // 8 * 8
    tb = max(8, min(block_b, half))
    tb = ((tb + 7) // 8) * 8
    b_pad = pl.cdiv(B, tb) * tb
    if b_pad != B:
        z = jnp.pad(z, ((0, b_pad - B), (0, 0)))

    tanh_dtype = (jnp.bfloat16
                  if (out_dtype == jnp.bfloat16 and _has_bf16_eup())
                  else jnp.float32)

    # Raise the scoped-VMEM limit only when large tiles actually need it.
    out_bytes = jnp.dtype(out_dtype).itemsize
    est = (2 * tb * (latent * 4 + out_f * out_bytes)          # pipelined z / out blocks
           + 2 * (latent * hidden + hidden * out_f) * 2       # bf16 weights (x2 buffers)
           + 2 * (hidden + out_f) * 4                         # f32 biases
           + 2 * tb * (hidden + out_f) * 4)                   # f32 h / y temporaries
    vmem_limit = None
    if est > 12 * 1024 * 1024:
        vmem_limit = int(min(max(2 * est, 32 * 1024 * 1024), 56 * 1024 * 1024))

    kernel = functools.partial(_generator_kernel, tanh_dtype=tanh_dtype)

    out = pl.pallas_call(
        kernel,
        out_shape=jax.ShapeDtypeStruct((b_pad, out_f), out_dtype),
        grid=(b_pad // tb,),
        in_specs=[
            pl.BlockSpec((tb, latent), lambda i: (i, 0)),      # z: tiled over batch
            pl.BlockSpec((latent, hidden), lambda i: (0, 0)),  # weights/biases:
            pl.BlockSpec((1, hidden), lambda i: (0, 0)),       # constant index_map ->
            pl.BlockSpec((hidden, out_f), lambda i: (0, 0)),   # VMEM-resident across
            pl.BlockSpec((1, out_f), lambda i: (0, 0)),        # all grid steps
        ],
        out_specs=pl.BlockSpec((tb, out_f), lambda i: (i, 0)),
        compiler_params=pltpu.CompilerParams(
            dimension_semantics=("parallel",),                 # megacore / 2-TC shard
            vmem_limit_bytes=vmem_limit),
    )(z, w1, b1, w2, b2)

    return out[:B] if b_pad != B else out


def init_params(key):
    """Deterministic DCGAN-style init (normal * 0.02), zero biases."""
    k1, k2 = jax.random.split(key)
    w1 = jax.random.normal(k1, (LATENT, HIDDEN), jnp.float32) * 0.02
    b1 = jnp.zeros((1, HIDDEN), jnp.float32)
    w2 = jax.random.normal(k2, (HIDDEN, OUT), jnp.float32) * 0.02
    b2 = jnp.zeros((1, OUT), jnp.float32)
    return w1, b1, w2, b2


def reference_forward(z, w1, b1, w2, b2):
    h = jnp.maximum(z @ w1 + b1, 0.0)
    return jnp.tanh(h @ w2 + b2)


if __name__ == "__main__":
    key = jax.random.PRNGKey(0)
    kz, kz2, kp = jax.random.split(key, 3)

    w1, b1, w2, b2 = init_params(kp)
    # One-time weight preparation (hoisted out of the forward call).
    w1p, b1p, w2p, b2p = prepare_generator_params(w1, b1, w2, b2)

    # --- small demo batch (grid = 1 step) -----------------------------------
    B = 8
    z = jax.random.normal(kz, (B, LATENT), jnp.float32)
    out = jax.block_until_ready(wgan_forward(z, w1p, b1p, w2p, b2p))
    ref = reference_forward(z, w1, b1, w2, b2)
    assert out.shape == (B, OUT), out.shape
    # bf16 matmul operands + bf16 output -> loosened tolerance vs f32 reference
    assert jnp.allclose(out.astype(jnp.float32), ref, atol=1e-2, rtol=1e-2), \
        "mismatch vs reference"

    # --- ragged batch exercising the batch grid + tail padding --------------
    B2 = 130
    z2 = jax.random.normal(kz2, (B2, LATENT), jnp.float32)
    out2 = jax.block_until_ready(
        wgan_forward(z2, w1p, b1p, w2p, b2p, block_b=64))
    ref2 = reference_forward(z2, w1, b1, w2, b2)
    assert out2.shape == (B2, OUT), out2.shape
    assert jnp.allclose(out2.astype(jnp.float32), ref2, atol=1e-2, rtol=1e-2), \
        "mismatch (gridded)"

    # --- f32 output path (exact PyTorch dtype semantics) --------------------
    out3 = jax.block_until_ready(
        wgan_forward(z, w1p, b1p, w2p, b2p, out_dtype=jnp.float32))
    assert out3.dtype == jnp.float32
    assert jnp.allclose(out3, ref, atol=1e-2, rtol=1e-2), "mismatch (f32 out)"

    # G_z.reshape(-1, 1, 28, 28) equivalent (done outside forward in PyTorch too)
    img = out.reshape(-1, 1, 28, 28)
    assert img.shape == (B, 1, 28, 28)

    print("KERNEL_OK")
</pallas_src>

<mosaic_0001>
module attributes {stable_mosaic.version = 11 : i64} {
  func.func @_generator_kernel(%arg0: i32, %arg1: memref<8x32xf32, #tpu.memory_space<vmem>>, %arg2: memref<32x128xbf16, #tpu.memory_space<vmem>>, %arg3: memref<1x128xf32, #tpu.memory_space<vmem>>, %arg4: memref<128x784xbf16, #tpu.memory_space<vmem>>, %arg5: memref<1x784xf32, #tpu.memory_space<vmem>>, %arg6: memref<8x784xbf16, #tpu.memory_space<vmem>>) attributes {dimension_semantics = [#tpu.dimension_semantics<parallel>], iteration_bounds = array<i64: 1>, scalar_prefetch = 0 : i64, scratch_operands = 0 : i64, tpu.core_type = #tpu.core_type<tc>, window_params = [{transform_indices = @transform_0, window_bounds = array<i64: 8, 32>}, {pipeline_mode = #tpu.pipeline_mode<synchronous>, transform_indices = @transform_1, window_bounds = array<i64: 32, 128>}, {pipeline_mode = #tpu.pipeline_mode<synchronous>, transform_indices = @transform_2, window_bounds = array<i64: 1, 128>}, {pipeline_mode = #tpu.pipeline_mode<synchronous>, transform_indices = @transform_3, window_bounds = array<i64: 128, 784>}, {pipeline_mode = #tpu.pipeline_mode<synchronous>, transform_indices = @transform_4, window_bounds = array<i64: 1, 784>}, {transform_indices = @transform_5, window_bounds = array<i64: 8, 784>}]} {
    %c0 = arith.constant 0 : index
    %c0_0 = arith.constant 0 : index
    %0 = vector.load %arg1[%c0, %c0_0] : memref<8x32xf32, #tpu.memory_space<vmem>>, vector<8x32xf32>
    %1 = arith.truncf %0 : vector<8x32xf32> to vector<8x32xbf16>
    %c0_1 = arith.constant 0 : index
    %c0_2 = arith.constant 0 : index
    %2 = vector.load %arg2[%c0_1, %c0_2] : memref<32x128xbf16, #tpu.memory_space<vmem>>, vector<32x128xbf16>
    %cst = arith.constant dense<0.000000e+00> : vector<8x128xf32>
    %3 = tpu.matmul %1, %2, %cst {dimension_numbers = #tpu.dot_dimension_numbers<[1], [0], [0], [1], [0, 0, 1, 1], [], []>} : vector<8x32xbf16>, vector<32x128xbf16>, vector<8x128xf32> -> vector<8x128xf32>
    %c0_3 = arith.constant 0 : index
    %c0_4 = arith.constant 0 : index
    %4 = vector.load %arg3[%c0_3, %c0_4] : memref<1x128xf32, #tpu.memory_space<vmem>>, vector<1x128xf32>
    %5 = vector.broadcast %4 : vector<1x128xf32> to vector<8x128xf32>
    %6 = arith.addf %3, %5 : vector<8x128xf32>
    %cst_5 = arith.constant 0.000000e+00 : f32
    %7 = vector.broadcast %cst_5 : f32 to vector<8x128xf32>
    %8 = arith.maximumf %6, %7 : vector<8x128xf32>
    %9 = arith.truncf %8 : vector<8x128xf32> to vector<8x128xbf16>
    %c0_6 = arith.constant 0 : index
    %c0_7 = arith.constant 0 : index
    %10 = vector.load %arg4[%c0_6, %c0_7] : memref<128x784xbf16, #tpu.memory_space<vmem>>, vector<128x784xbf16>
    %cst_8 = arith.constant dense<0.000000e+00> : vector<8x784xf32>
    %11 = tpu.matmul %9, %10, %cst_8 {dimension_numbers = #tpu.dot_dimension_numbers<[1], [0], [0], [1], [0, 0, 1, 1], [], []>} : vector<8x128xbf16>, vector<128x784xbf16>, vector<8x784xf32> -> vector<8x784xf32>
    %c0_9 = arith.constant 0 : index
    %c0_10 = arith.constant 0 : index
    %12 = vector.load %arg5[%c0_9, %c0_10] : memref<1x784xf32, #tpu.memory_space<vmem>>, vector<1x784xf32>
    %13 = vector.broadcast %12 : vector<1x784xf32> to vector<8x784xf32>
    %14 = arith.addf %11, %13 : vector<8x784xf32>
    %15 = arith.truncf %14 : vector<8x784xf32> to vector<8x784xbf16>
    %16 = math.tanh %15 : vector<8x784xbf16>
    %c0_11 = arith.constant 0 : index
    %c0_12 = arith.constant 0 : index
    %17 = vector.load %arg6[%c0_11, %c0_12] : memref<8x784xbf16, #tpu.memory_space<vmem>>, vector<8x784xbf16>
    tpu.vector_store %arg6[%c0_11, %c0_12], %16 {strides = array<i32>} : memref<8x784xbf16, #tpu.memory_space<vmem>>, vector<8x784xbf16>,
    return
  }
  func.func @transform_0(%arg0: i32) -> (i32, i32) {
    %c0_i32 = arith.constant 0 : i32
    %c0_i32_0 = arith.constant 0 : i32
    return %arg0, %c0_i32 : i32, i32
  }
  func.func @transform_1(%arg0: i32) -> (i32, i32) {
    %c0_i32 = arith.constant 0 : i32
    %c0_i32_0 = arith.constant 0 : i32
    %c0_i32_1 = arith.constant 0 : i32
    return %c0_i32, %c0_i32_0 : i32, i32
  }
  func.func @transform_2(%arg0: i32) -> (i32, i32) {
    %c0_i32 = arith.constant 0 : i32
    %c0_i32_0 = arith.constant 0 : i32
    %c0_i32_1 = arith.constant 0 : i32
    return %c0_i32, %c0_i32_0 : i32, i32
  }
  func.func @transform_3(%arg0: i32) -> (i32, i32) {
    %c0_i32 = arith.constant 0 : i32
    %c0_i32_0 = arith.constant 0 : i32
    %c0_i32_1 = arith.constant 0 : i32
    return %c0_i32, %c0_i32_0 : i32, i32
  }
  func.func @transform_4(%arg0: i32) -> (i32, i32) {
    %c0_i32 = arith.constant 0 : i32
    %c0_i32_0 = arith.constant 0 : i32
    %c0_i32_1 = arith.constant 0 : i32
    return %c0_i32, %c0_i32_0 : i32, i32
  }
  func.func @transform_5(%arg0: i32) -> (i32, i32) {
    %c0_i32 = arith.constant 0 : i32
    %c0_i32_0 = arith.constant 0 : i32
    return %arg0, %c0_i32 : i32, i32
  }
}

</mosaic_0001>

<llo_original>
// kernel: tpu_custom_call.1
$region0: #{tpu_custom_call.1}
  #allocation0 [shape = 'u32[]', space=smem, size = 0x4, offset = 0x4, fixed_abs, tag = 'smem constant byte address 0x4 - core index']
  #allocation1 [shape = 'u32[144,128]{1,0:T(1,128)}', space=vmem, size = 0x12000, scoped, tag = 'internal scratch']
  %s0 = inlined_call_operand.vmem [shape: f32[8,32], index: 0, kind: input, shape index: {}]
  %s1 = inlined_call_operand.vmem [shape: bf16[32,128], index: 1, kind: input, shape index: {}]
  %s2 = inlined_call_operand.vmem [shape: f32[1,128], index: 2, kind: input, shape index: {}]
  %s3 = inlined_call_operand.vmem [shape: bf16[128,784], index: 3, kind: input, shape index: {}]
  %s4 = inlined_call_operand.vmem [shape: f32[1,784], index: 4, kind: input, shape index: {}]
  %s5 = inlined_call_operand.hbm [shape: bf16[8,784], index: 5, kind: output, shape index: {}]
  %s6 = sld [smem:[#allocation0]]
  $region30: #{tpu_custom_call.1} parent=0
    _
  %s8 = ssub.s32 1, %s6
  %s9 = scalar_select 0, %s8, %s6
  $region1: #{tpu_custom_call.1} parent=0
    #allocation2 [shape = 'u8[14336]{0}', space=vmem, size = 0x3800, scoped, tag = 'output window, operand 0, single buffered']
    #allocation3 [shape = 's32[1]{0}', space=sflag, size = 0x4, scoped, tag = 'scoped memory for tpu_custom_call.1']
    %10 = vsyncpa [#allocation3], 0
    // Predicated region
    $region2: #{tpu_custom_call.1} parent=1 // pred_check
      _
    $region3: #{tpu_custom_call.1} parent=1 // pred_check_branch
      %12 = sbr.rel (0) target = $region5
    $region4: #{tpu_custom_call.1} parent=1 // pred_region
      _
    $region5: #{tpu_custom_call.1} parent=1 // pred_fallthru
      _
    // Predicated region
    $region6: #{tpu_custom_call.1} parent=1 // pred_check
      _
    $region7: #{tpu_custom_call.1} parent=1 // pred_check_branch
      %14 = sbr.rel (0) target = $region9
    $region8: #{tpu_custom_call.1} parent=1 // pred_region
      _
    $region9: #{tpu_custom_call.1} parent=1 // pred_fallthru
      _
    // Predicated region
    $region10: #{tpu_custom_call.1} parent=1 // pred_check
      _
    $region11: #{tpu_custom_call.1} parent=1 // pred_check_branch
      %16 = sbr.rel (0) target = $region13
    $region12: #{tpu_custom_call.1} parent=1 // pred_region
      _
    $region13: #{tpu_custom_call.1} parent=1 // pred_fallthru
      _
    // Predicated region
    $region14: #{tpu_custom_call.1} parent=1 // pred_check
      _
    $region15: #{tpu_custom_call.1} parent=1 // pred_check_branch
      %18 = sbr.rel (0) target = $region17
    $region16: #{tpu_custom_call.1} parent=1 // pred_region
      _
    $region17: #{tpu_custom_call.1} parent=1 // pred_fallthru
      _
    // Predicated region
    $region18: #{tpu_custom_call.1} parent=1 // pred_check
      _
    $region19: #{tpu_custom_call.1} parent=1 // pred_check_branch
      %20 = sbr.rel (0) target = $region21
    $region20: #{tpu_custom_call.1} parent=1 // pred_region
      _
    $region21: #{tpu_custom_call.1} parent=1 // pred_fallthru
      _
    %v22 = vld [vmem:[%s0] sm:$0xff]
    %v23 = vpack.c.bf16 %v22, %v22
    %v24 = vld [vmem:[%s1] sm:$0xf]
    %v25 = vld [vmem:[%s1 + $0x4] sm:$0xf]
    %v26 = vld [vmem:[%s1 + $0x8] sm:$0xf]
    %v27 = vld [vmem:[%s1 + $0xc] sm:$0xf]
    %v28 = vld [vmem:[%s2] sm:$0x1]
    %v30 = vlaneseq
    %v31 = vshrl.u32 %v30, 7
    %v32 = vsub.s32 0, %v31
    %v33 = vrot.slane %v28, %v32
    %v39 = vunpack.c.l.b16 %v24
    %v40 = vunpack.c.l.b16 %v25
    %v41 = vunpack.c.l.b16 %v26
    %v42 = vunpack.c.l.b16 %v27
    %v43 = vpack.c.b16 %v40, %v39
    %v44 = vpack.c.b16 %v42, %v41
    %vm47 = vcmask 261120
    %v49 = vsel %vm47, %v23, 0
    %51 = vmatprep.subr.bf16.mxu0 0
    %52 = vmatpush1.bf16.msra.mxu0 %v43
    %53 = vmatprep.subr.bf16.mxu0 0
    %54 = vmatpush1.bf16.msra.mxu0 %v44
    %55 = vmatprep.subr.bf16.mxu0 0
    %56 = vmatpush1.bf16.msra.mxu0 0
    %57 = vmatprep.subr.bf16.mxu0 0
    %58 = vmatpush1.bf16.msra.mxu0 0
    %59 = vmatprep.subr.bf16.mxu0 0
    %60 = vmatpush1.bf16.msra.mxu0 0
    %61 = vmatprep.subr.bf16.mxu0 0
    %62 = vmatpush1.bf16.msra.mxu0 0
    %63 = vmatprep.subr.bf16.mxu0 0
    %64 = vmatpush1.bf16.msra.mxu0 0
    %65 = vmatprep.subr.bf16.mxu0 0
    %66 = vmatpush1.bf16.msra.mxu0 0
    %67 = vmatprep.subr.bf16.mxu0 0
    %68 = vmatpush1.bf16.msra.mxu0 0
    %69 = vmatprep.subr.bf16.mxu0 0
    %70 = vmatpush1.bf16.msra.mxu0 0
    %71 = vmatprep.subr.bf16.mxu0 0
    %72 = vmatpush1.bf16.msra.mxu0 0
    %73 = vmatprep.subr.bf16.mxu0 0
    %74 = vmatpush1.bf16.msra.mxu0 0
    %75 = vmatprep.subr.bf16.mxu0 0
    %76 = vmatpush1.bf16.msra.mxu0 0
    %77 = vmatprep.subr.bf16.mxu0 0
    %78 = vmatpush1.bf16.msra.mxu0 0
    %79 = vmatprep.subr.bf16.mxu0 0
    %80 = vmatpush1.bf16.msra.mxu0 0
    %81 = vmatprep.subr.bf16.mxu0 0
    %82 = vmatpush1.bf16.msra.mxu0 0
    %83 = vmatprep.mubr.bf16.mxu0 0
    %84 = vmatmul.mubr.bf16.gmra.mrb[0].mxu0 %v49
    %v85 = vpop.f32.mrb[0].mxu0
    %v86 = vadd.f32 %v33, %v85
    %v87 = vpop.f32.mrb[0].mxu0
    %v88 = vpop.f32.mrb[0].mxu0
    %v89 = vpop.f32.mrb[0].mxu0
    %90 = vdwg.mxu0
    %v91 = vmax.f32 %v86, 0.0
    %v92 = vpack.c.bf16 %v91, %v91
    %v93 = vld [vmem:[%s3] sm:$0xff]
    %v94 = vld [vmem:[%s3 + $0x8] sm:$0xff]
    %v95 = vld [vmem:[%s3 + $0x10] sm:$0xff]
    %v96 = vld [vmem:[%s3 + $0x18] sm:$0xf]
    %v97 = vld [vmem:[%s3 + $0x1c] sm:$0xff]
    %v98 = vld [vmem:[%s3 + $0x24] sm:$0xff]
    %v99 = vld [vmem:[%s3 + $0x2c] sm:$0xff]
    %v100 = vld [vmem:[%s3 + $0x34] sm:$0xf]
    %v101 = vld [vmem:[%s3 + $0x38] sm:$0xff]
    %v102 = vld [vmem:[%s3 + $0x40] sm:$0xff]
    %v103 = vld [vmem:[%s3 + $0x48] sm:$0xff]
    %v104 = vld [vmem:[%s3 + $0x50] sm:$0xf]
    %v105 = vld [vmem:[%s3 + $0x54] sm:$0xff]
    %v106 = vld [vmem:[%s3 + $0x5c] sm:$0xff]
    %v107 = vld [vmem:[%s3 + $0x64] sm:$0xff]
    %v108 = vld [vmem:[%s3 + $0x6c] sm:$0xf]
    %v109 = vld [vmem:[%s3 + $0x70] sm:$0xff]
    %v110 = vld [vmem:[%s3 + $0x78] sm:$0xff]
    %v111 = vld [vmem:[%s3 + $0x80] sm:$0xff]
    %v112 = vld [vmem:[%s3 + $0x88] sm:$0xf]
    %v113 = vld [vmem:[%s3 + $0x8c] sm:$0xff]
    %v114 = vld [vmem:[%s3 + $0x94] sm:$0xff]
    %v115 = vld [vmem:[%s3 + $0x9c] sm:$0xff]
    %v116 = vld [vmem:[%s3 + $0xa4] sm:$0xf]
    %v117 = vld [vmem:[%s3 + $0xa8] sm:$0xff]
    %v118 = vld [vmem:[%s3 + $0xb0] sm:$0xff]
    %v119 = vld [vmem:[%s3 + $0xb8] sm:$0xff]
    %v120 = vld [vmem:[%s3 + $0xc0] sm:$0xf]
    %v121 = vld [vmem:[%s3 + $0xc4] sm:$0xff]
    %v122 = vld [vmem:[%s3 + $0xcc] sm:$0xff]
    %v123 = vld [vmem:[%s3 + $0xd4] sm:$0xff]
    %v124 = vld [vmem:[%s3 + $0xdc] sm:$0xf]
    %v125 = vld [vmem:[%s3 + $0xe0] sm:$0xff]
    %v126 = vld [vmem:[%s3 + $0xe8] sm:$0xff]
    %v127 = vld [vmem:[%s3 + $0xf0] sm:$0xff]
    %v128 = vld [vmem:[%s3 + $0xf8] sm:$0xf]
    %v129 = vld [vmem:[%s3 + $0xfc] sm:$0xff]
    %v130 = vld [vmem:[%s3 + $0x104] sm:$0xff]
    %v131 = vld [vmem:[%s3 + $0x10c] sm:$0xff]
    %v132 = vld [vmem:[%s3 + $0x114] sm:$0xf]
    %v133 = vld [vmem:[%s3 + $0x118] sm:$0xff]
    %v134 = vld [vmem:[%s3 + $0x120] sm:$0xff]
    %v135 = vld [vmem:[%s3 + $0x128] sm:$0xff]
    %v136 = vld [vmem:[%s3 + $0x130] sm:$0xf]
    %v137 = vld [vmem:[%s3 + $0x134] sm:$0xff]
    %v138 = vld [vmem:[%s3 + $0x13c] sm:$0xff]
    %v139 = vld [vmem:[%s3 + $0x144] sm:$0xff]
    %v140 = vld [vmem:[%s3 + $0x14c] sm:$0xf]
    %v141 = vld [vmem:[%s3 + $0x150] sm:$0xff]
    %v142 = vld [vmem:[%s3 + $0x158] sm:$0xff]
    %v143 = vld [vmem:[%s3 + $0x160] sm:$0xff]
    %v144 = vld [vmem:[%s3 + $0x168] sm:$0xf]
    %v145 = vld [vmem:[%s3 + $0x16c] sm:$0xff]
    %v146 = vld [vmem:[%s3 + $0x174] sm:$0xff]
    %v147 = vld [vmem:[%s3 + $0x17c] sm:$0xff]
    %v148 = vld [vmem:[%s3 + $0x184] sm:$0xf]
    %v149 = vld [vmem:[%s3 + $0x188] sm:$0xff]
    %v150 = vld [vmem:[%s3 + $0x190] sm:$0xff]
    %v151 = vld [vmem:[%s3 + $0x198] sm:$0xff]
    %v152 = vld [vmem:[%s3 + $0x1a0] sm:$0xf]
    %v153 = vld [vmem:[%s3 + $0x1a4] sm:$0xff]
    %v154 = vld [vmem:[%s3 + $0x1ac] sm:$0xff]
    %v155 = vld [vmem:[%s3 + $0x1b4] sm:$0xff]
    %v156 = vld [vmem:[%s3 + $0x1bc] sm:$0xf]
    %v157 = vld [vmem:[%s4] sm:$0x7f]
    %v159 = vlaneseq
    %v160 = vshrl.u32 %v159, 7
    %v161 = vsub.s32 0, %v160
    %v162 = vrot.slane %v157, %v161
    %v163 = vlaneseq
    %v164 = vshrl.u32 %v163, 7
    %v165 = vsub.s32 1, %v164
    %v166 = vrot.slane %v157, %v165
    %v167 = vlaneseq
    %v168 = vshrl.u32 %v167, 7
    %v169 = vsub.s32 2, %v168
    %v170 = vrot.slane %v157, %v169
    %v171 = vlaneseq
    %v172 = vshrl.u32 %v171, 7
    %v173 = vsub.s32 3, %v172
    %v174 = vrot.slane %v157, %v173
    %v175 = vlaneseq
    %v176 = vshrl.u32 %v175, 7
    %v177 = vsub.s32 4, %v176
    %v178 = vrot.slane %v157, %v177
    %v179 = vlaneseq
    %v180 = vshrl.u32 %v179, 7
    %v181 = vsub.s32 5, %v180
    %v182 = vrot.slane %v157, %v181
    %v183 = vlaneseq
    %v184 = vshrl.u32 %v183, 7
    %v185 = vsub.s32 6, %v184
    %v186 = vrot.slane %v157, %v185
    %v258 = vunpack.c.l.b16 %v93
    %v259 = vunpack.c.h.b16 %v93
    %v260 = vunpack.c.l.b16 %v94
    %v261 = vunpack.c.h.b16 %v94
    %v262 = vunpack.c.l.b16 %v95
    %v263 = vunpack.c.h.b16 %v95
    %v264 = vunpack.c.l.b16 %v96
    %v265 = vunpack.c.l.b16 %v97
    %v266 = vunpack.c.h.b16 %v97
    %v267 = vunpack.c.l.b16 %v98
    %v268 = vunpack.c.h.b16 %v98
    %v269 = vunpack.c.l.b16 %v99
    %v270 = vunpack.c.h.b16 %v99
    %v271 = vunpack.c.l.b16 %v100
    %v272 = vunpack.c.l.b16 %v101
    %v273 = vunpack.c.h.b16 %v101
    %v274 = vunpack.c.l.b16 %v102
    %v275 = vunpack.c.h.b16 %v102
    %v276 = vunpack.c.l.b16 %v103
    %v277 = vunpack.c.h.b16 %v103
    %v278 = vunpack.c.l.b16 %v104
    %v279 = vunpack.c.l.b16 %v105
    %v280 = vunpack.c.h.b16 %v105
    %v281 = vunpack.c.l.b16 %v106
    %v282 = vunpack.c.h.b16 %v106
    %v283 = vunpack.c.l.b16 %v107
    %v284 = vunpack.c.h.b16 %v107
    %v285 = vunpack.c.l.b16 %v108
    %v286 = vunpack.c.l.b16 %v109
    %v287 = vunpack.c.h.b16 %v109
    %v288 = vunpack.c.l.b16 %v110
    %v289 = vunpack.c.h.b16 %v110
    %v290 = vunpack.c.l.b16 %v111
    %v291 = vunpack.c.h.b16 %v111
    %v292 = vunpack.c.l.b16 %v112
    %v293 = vunpack.c.l.b16 %v113
    %v294 = vunpack.c.h.b16 %v113
    %v295 = vunpack.c.l.b16 %v114
    %v296 = vunpack.c.h.b16 %v114
    %v297 = vunpack.c.l.b16 %v115
    %v298 = vunpack.c.h.b16 %v115
    %v299 = vunpack.c.l.b16 %v116
    %v300 = vunpack.c.l.b16 %v117
    %v301 = vunpack.c.h.b16 %v117
    %v302 = vunpack.c.l.b16 %v118
    %v303 = vunpack.c.h.b16 %v118
    %v304 = vunpack.c.l.b16 %v119
    %v305 = vunpack.c.h.b16 %v119
    %v306 = vunpack.c.l.b16 %v120
    %v307 = vunpack.c.l.b16 %v121
    %v308 = vunpack.c.h.b16 %v121
    %v309 = vunpack.c.l.b16 %v122
    %v310 = vunpack.c.h.b16 %v122
    %v311 = vunpack.c.l.b16 %v123
    %v312 = vunpack.c.h.b16 %v123
    %v313 = vunpack.c.l.b16 %v124
    %v314 = vunpack.c.l.b16 %v125
    %v315 = vunpack.c.h.b16 %v125
    %v316 = vunpack.c.l.b16 %v126
    %v317 = vunpack.c.h.b16 %v126
    %v318 = vunpack.c.l.b16 %v127
    %v319 = vunpack.c.h.b16 %v127
    %v320 = vunpack.c.l.b16 %v128
    %v321 = vunpack.c.l.b16 %v129
    %v322 = vunpack.c.h.b16 %v129
    %v323 = vunpack.c.l.b16 %v130
    %v324 = vunpack.c.h.b16 %v130
    %v325 = vunpack.c.l.b16 %v131
    %v326 = vunpack.c.h.b16 %v131
    %v327 = vunpack.c.l.b16 %v132
    %v328 = vunpack.c.l.b16 %v133
    %v329 = vunpack.c.h.b16 %v133
    %v330 = vunpack.c.l.b16 %v134
    %v331 = vunpack.c.h.b16 %v134
    %v332 = vunpack.c.l.b16 %v135
    %v333 = vunpack.c.h.b16 %v135
    %v334 = vunpack.c.l.b16 %v136
    %v335 = vunpack.c.l.b16 %v137
    %v336 = vunpack.c.h.b16 %v137
    %v337 = vunpack.c.l.b16 %v138
    %v338 = vunpack.c.h.b16 %v138
    %v339 = vunpack.c.l.b16 %v139
    %v340 = vunpack.c.h.b16 %v139
    %v341 = vunpack.c.l.b16 %v140
    %v342 = vunpack.c.l.b16 %v141
    %v343 = vunpack.c.h.b16 %v141
    %v344 = vunpack.c.l.b16 %v142
    %v345 = vunpack.c.h.b16 %v142
    %v346 = vunpack.c.l.b16 %v143
    %v347 = vunpack.c.h.b16 %v143
    %v348 = vunpack.c.l.b16 %v144
    %v349 = vunpack.c.l.b16 %v145
    %v350 = vunpack.c.h.b16 %v145
    %v351 = vunpack.c.l.b16 %v146
    %v352 = vunpack.c.h.b16 %v146
    %v353 = vunpack.c.l.b16 %v147
    %v354 = vunpack.c.h.b16 %v147
    %v355 = vunpack.c.l.b16 %v148
    %v356 = vunpack.c.l.b16 %v149
    %v357 = vunpack.c.h.b16 %v149
    %v358 = vunpack.c.l.b16 %v150
    %v359 = vunpack.c.h.b16 %v150
    %v360 = vunpack.c.l.b16 %v151
    %v361 = vunpack.c.h.b16 %v151
    %v362 = vunpack.c.l.b16 %v152
    %v363 = vunpack.c.l.b16 %v153
    %v364 = vunpack.c.h.b16 %v153
    %v365 = vunpack.c.l.b16 %v154
    %v366 = vunpack.c.h.b16 %v154
    %v367 = vunpack.c.l.b16 %v155
    %v368 = vunpack.c.h.b16 %v155
    %v369 = vunpack.c.l.b16 %v156
    %v370 = vpack.c.b16 %v265, %v258
    %v371 = vpack.c.b16 %v266, %v259
    %v372 = vpack.c.b16 %v267, %v260
    %v373 = vpack.c.b16 %v268, %v261
    %v374 = vpack.c.b16 %v269, %v262
    %v375 = vpack.c.b16 %v270, %v263
    %v376 = vpack.c.b16 %v271, %v264
    %v377 = vpack.c.b16 %v279, %v272
    %v378 = vpack.c.b16 %v280, %v273
    %v379 = vpack.c.b16 %v281, %v274
    %v380 = vpack.c.b16 %v282, %v275
    %v381 = vpack.c.b16 %v283, %v276
    %v382 = vpack.c.b16 %v284, %v277
    %v383 = vpack.c.b16 %v285, %v278
    %v384 = vpack.c.b16 %v293, %v286
    %v385 = vpack.c.b16 %v294, %v287
    %v386 = vpack.c.b16 %v295, %v288
    %v387 = vpack.c.b16 %v296, %v289
    %v388 = vpack.c.b16 %v297, %v290
    %v389 = vpack.c.b16 %v298, %v291
    %v390 = vpack.c.b16 %v299, %v292
    %v391 = vpack.c.b16 %v307, %v300
    %v392 = vpack.c.b16 %v308, %v301
    %v393 = vpack.c.b16 %v309, %v302
    %v394 = vpack.c.b16 %v310, %v303
    %v395 = vpack.c.b16 %v311, %v304
    %v396 = vpack.c.b16 %v312, %v305
    %v397 = vpack.c.b16 %v313, %v306
    %v398 = vpack.c.b16 %v321, %v314
    %v399 = vpack.c.b16 %v322, %v315
    %v400 = vpack.c.b16 %v323, %v316
    %v401 = vpack.c.b16 %v324, %v317
    %v402 = vpack.c.b16 %v325, %v318
    %v403 = vpack.c.b16 %v326, %v319
    %v404 = vpack.c.b16 %v327, %v320
    %v405 = vpack.c.b16 %v335, %v328
    %v406 = vpack.c.b16 %v336, %v329
    %v407 = vpack.c.b16 %v337, %v330
    %v408 = vpack.c.b16 %v338, %v331
    %v409 = vpack.c.b16 %v339, %v332
    %v410 = vpack.c.b16 %v340, %v333
    %v411 = vpack.c.b16 %v341, %v334
    %v412 = vpack.c.b16 %v349, %v342
    %v413 = vpack.c.b16 %v350, %v343
    %v414 = vpack.c.b16 %v351, %v344
    %v415 = vpack.c.b16 %v352, %v345
    %v416 = vpack.c.b16 %v353, %v346
    %v417 = vpack.c.b16 %v354, %v347
    %v418 = vpack.c.b16 %v355, %v348
    %v419 = vpack.c.b16 %v363, %v356
    %v420 = vpack.c.b16 %v364, %v357
    %v421 = vpack.c.b16 %v365, %v358
    %v422 = vpack.c.b16 %v366, %v359
    %v423 = vpack.c.b16 %v367, %v360
    %v424 = vpack.c.b16 %v368, %v361
    %v425 = vpack.c.b16 %v369, %v362
    %482 = vmatprep.subr.bf16.mxu0 %v371
    %483 = vmatpush1.bf16.msra.mxu0 %v370
    %484 = vmatprep.subr.bf16.mxu0 %v378
    %485 = vmatpush1.bf16.msra.mxu0 %v377
    %486 = vmatprep.subr.bf16.mxu0 %v385
    %487 = vmatpush1.bf16.msra.mxu0 %v384
    %488 = vmatprep.subr.bf16.mxu0 %v392
    %489 = vmatpush1.bf16.msra.mxu0 %v391
    %490 = vmatprep.subr.bf16.mxu0 %v399
    %491 = vmatpush1.bf16.msra.mxu0 %v398
    %492 = vmatprep.subr.bf16.mxu0 %v406
    %493 = vmatpush1.bf16.msra.mxu0 %v405
    %494 = vmatprep.subr.bf16.mxu0 %v413
    %495 = vmatpush1.bf16.msra.mxu0 %v412
    %496 = vmatprep.subr.bf16.mxu0 %v420
    %497 = vmatpush1.bf16.msra.mxu0 %v419
    %498 = vmatprep.subr.bf16.mxu0 0
    %499 = vmatpush1.bf16.msra.mxu0 0
    %500 = vmatprep.subr.bf16.mxu0 0
    %501 = vmatpush1.bf16.msra.mxu0 0
    %502 = vmatprep.subr.bf16.mxu0 0
    %503 = vmatpush1.bf16.msra.mxu0 0
    %504 = vmatprep.subr.bf16.mxu0 0
    %505 = vmatpush1.bf16.msra.mxu0 0
    %506 = vmatprep.subr.bf16.mxu0 0
    %507 = vmatpush1.bf16.msra.mxu0 0
    %508 = vmatprep.subr.bf16.mxu0 0
    %509 = vmatpush1.bf16.msra.mxu0 0
    %510 = vmatprep.subr.bf16.mxu0 0
    %511 = vmatpush1.bf16.msra.mxu0 0
    %512 = vmatprep.subr.bf16.mxu0 0
    %513 = vmatpush1.bf16.msra.mxu0 0
    %514 = vmatprep.mubr.bf16.mxu0 0
    %515 = vmatmul.mubr.bf16.gmra.mrb[0].mxu0 %v92
    %v516 = vpop.f32.mrb[0].mxu0
    %v517 = vadd.f32 %v162, %v516
    %v518 = vpop.f32.mrb[0].mxu0
    %v519 = vadd.f32 %v166, %v518
    %v520 = vpop.f32.mrb[0].mxu0
    %v521 = vpop.f32.mrb[0].mxu0
    %522 = vdwg.mxu0
    %523 = vmatprep.subr.bf16.mxu0 %v373
    %524 = vmatpush1.bf16.msra.mxu0 %v372
    %525 = vmatprep.subr.bf16.mxu0 %v380
    %526 = vmatpush1.bf16.msra.mxu0 %v379
    %527 = vmatprep.subr.bf16.mxu0 %v387
    %528 = vmatpush1.bf16.msra.mxu0 %v386
    %529 = vmatprep.subr.bf16.mxu0 %v394
    %530 = vmatpush1.bf16.msra.mxu0 %v393
    %531 = vmatprep.subr.bf16.mxu0 %v401
    %532 = vmatpush1.bf16.msra.mxu0 %v400
    %533 = vmatprep.subr.bf16.mxu0 %v408
    %534 = vmatpush1.bf16.msra.mxu0 %v407
    %535 = vmatprep.subr.bf16.mxu0 %v415
    %536 = vmatpush1.bf16.msra.mxu0 %v414
    %537 = vmatprep.subr.bf16.mxu0 %v422
    %538 = vmatpush1.bf16.msra.mxu0 %v421
    %539 = vmatprep.subr.bf16.mxu0 0
    %540 = vmatpush1.bf16.msra.mxu0 0
    %541 = vmatprep.subr.bf16.mxu0 0
    %542 = vmatpush1.bf16.msra.mxu0 0
    %543 = vmatprep.subr.bf16.mxu0 0
    %544 = vmatpush1.bf16.msra.mxu0 0
    %545 = vmatprep.subr.bf16.mxu0 0
    %546 = vmatpush1.bf16.msra.mxu0 0
    %547 = vmatprep.subr.bf16.mxu0 0
    %548 = vmatpush1.bf16.msra.mxu0 0
    %549 = vmatprep.subr.bf16.mxu0 0
    %550 = vmatpush1.bf16.msra.mxu0 0
    %551 = vmatprep.subr.bf16.mxu0 0
    %552 = vmatpush1.bf16.msra.mxu0 0
    %553 = vmatprep.subr.bf16.mxu0 0
    %554 = vmatpush1.bf16.msra.mxu0 0
    %555 = vmatprep.mubr.bf16.mxu0 0
    %556 = vmatmul.mubr.bf16.gmra.mrb[0].mxu0 %v92
    %v557 = vpop.f32.mrb[0].mxu0
    %v558 = vadd.f32 %v170, %v557
    %v559 = vpop.f32.mrb[0].mxu0
    %v560 = vadd.f32 %v174, %v559
    %v561 = vpop.f32.mrb[0].mxu0
    %v562 = vpop.f32.mrb[0].mxu0
    %563 = vdwg.mxu0
    %564 = vmatprep.subr.bf16.mxu0 %v375
    %565 = vmatpush1.bf16.msra.mxu0 %v374
    %566 = vmatprep.subr.bf16.mxu0 %v382
    %567 = vmatpush1.bf16.msra.mxu0 %v381
    %568 = vmatprep.subr.bf16.mxu0 %v389
    %569 = vmatpush1.bf16.msra.mxu0 %v388
    %570 = vmatprep.subr.bf16.mxu0 %v396
    %571 = vmatpush1.bf16.msra.mxu0 %v395
    %572 = vmatprep.subr.bf16.mxu0 %v403
    %573 = vmatpush1.bf16.msra.mxu0 %v402
    %574 = vmatprep.subr.bf16.mxu0 %v410
    %575 = vmatpush1.bf16.msra.mxu0 %v409
    %576 = vmatprep.subr.bf16.mxu0 %v417
    %577 = vmatpush1.bf16.msra.mxu0 %v416
    %578 = vmatprep.subr.bf16.mxu0 %v424
    %579 = vmatpush1.bf16.msra.mxu0 %v423
    %580 = vmatprep.subr.bf16.mxu0 0
    %581 = vmatpush1.bf16.msra.mxu0 0
    %582 = vmatprep.subr.bf16.mxu0 0
    %583 = vmatpush1.bf16.msra.mxu0 0
    %584 = vmatprep.subr.bf16.mxu0 0
    %585 = vmatpush1.bf16.msra.mxu0 0
    %586 = vmatprep.subr.bf16.mxu0 0
    %587 = vmatpush1.bf16.msra.mxu0 0
    %588 = vmatprep.subr.bf16.mxu0 0
    %589 = vmatpush1.bf16.msra.mxu0 0
    %590 = vmatprep.subr.bf16.mxu0 0
    %591 = vmatpush1.bf16.msra.mxu0 0
    %592 = vmatprep.subr.bf16.mxu0 0
    %593 = vmatpush1.bf16.msra.mxu0 0
    %594 = vmatprep.subr.bf16.mxu0 0
    %595 = vmatpush1.bf16.msra.mxu0 0
    %596 = vmatprep.mubr.bf16.mxu0 0
    %597 = vmatmul.mubr.bf16.gmra.mrb[0].mxu0 %v92
    %v598 = vpop.f32.mrb[0].mxu0
    %v599 = vadd.f32 %v178, %v598
    %v600 = vpop.f32.mrb[0].mxu0
    %v601 = vadd.f32 %v182, %v600
    %v602 = vpop.f32.mrb[0].mxu0
    %v603 = vpop.f32.mrb[0].mxu0
    %604 = vdwg.mxu0
    %605 = vmatprep.subr.bf16.mxu0 0
    %606 = vmatpush1.bf16.msra.mxu0 %v376
    %607 = vmatprep.subr.bf16.mxu0 0
    %608 = vmatpush1.bf16.msra.mxu0 %v383
    %609 = vmatprep.subr.bf16.mxu0 0
    %610 = vmatpush1.bf16.msra.mxu0 %v390
    %611 = vmatprep.subr.bf16.mxu0 0
    %612 = vmatpush1.bf16.msra.mxu0 %v397
    %613 = vmatprep.subr.bf16.mxu0 0
    %614 = vmatpush1.bf16.msra.mxu0 %v404
    %615 = vmatprep.subr.bf16.mxu0 0
    %616 = vmatpush1.bf16.msra.mxu0 %v411
    %617 = vmatprep.subr.bf16.mxu0 0
    %618 = vmatpush1.bf16.msra.mxu0 %v418
    %619 = vmatprep.subr.bf16.mxu0 0
    %620 = vmatpush1.bf16.msra.mxu0 %v425
    %621 = vmatprep.subr.bf16.mxu0 0
    %622 = vmatpush1.bf16.msra.mxu0 0
    %623 = vmatprep.subr.bf16.mxu0 0
    %624 = vmatpush1.bf16.msra.mxu0 0
    %625 = vmatprep.subr.bf16.mxu0 0
    %626 = vmatpush1.bf16.msra.mxu0 0
    %627 = vmatprep.subr.bf16.mxu0 0
    %628 = vmatpush1.bf16.msra.mxu0 0
    %629 = vmatprep.subr.bf16.mxu0 0
    %630 = vmatpush1.bf16.msra.mxu0 0
    %631 = vmatprep.subr.bf16.mxu0 0
    %632 = vmatpush1.bf16.msra.mxu0 0
    %633 = vmatprep.subr.bf16.mxu0 0
    %634 = vmatpush1.bf16.msra.mxu0 0
    %635 = vmatprep.subr.bf16.mxu0 0
    %636 = vmatpush1.bf16.msra.mxu0 0
    %637 = vmatprep.mubr.bf16.mxu0 0
    %638 = vmatmul.mubr.bf16.gmra.mrb[0].mxu0 %v92
    %v639 = vpop.f32.mrb[0].mxu0
    %v640 = vadd.f32 %v186, %v639
    %v641 = vpop.f32.mrb[0].mxu0
    %v642 = vpop.f32.mrb[0].mxu0
    %v643 = vpop.f32.mrb[0].mxu0
    %644 = vdwg.mxu0
    %v645 = vpack.c.bf16 %v517, %v517
    %v646 = vpack.c.bf16 %v519, %v519
    %v647 = vpack.c.bf16 %v558, %v558
    %v648 = vpack.c.bf16 %v560, %v560
    %v649 = vpack.c.bf16 %v599, %v599
    %v650 = vpack.c.bf16 %v601, %v601
    %v651 = vpack.c.bf16 %v640, %v640
    %v652 = vtanh.bf16.pop %v645
    %v653 = vtanh.bf16.pop %v646
    %v654 = vtanh.bf16.pop %v647
    %v655 = vtanh.bf16.pop %v648
    %v656 = vtanh.bf16.pop %v649
    %v657 = vtanh.bf16.pop %v650
    %v658 = vtanh.bf16.pop %v651
    %v666 = vunpack.c.l.b16 %v652
    %v667 = vunpack.c.l.b16 %v653
    %v668 = vunpack.c.l.b16 %v654
    %v669 = vunpack.c.l.b16 %v655
    %v670 = vunpack.c.l.b16 %v656
    %v671 = vunpack.c.l.b16 %v657
    %v672 = vunpack.c.l.b16 %v658
    %v673 = vpack.c.b16 %v667, %v666
    %v674 = vpack.c.b16 %v669, %v668
    %v675 = vpack.c.b16 %v671, %v670
    %v676 = vpack.c.b16 %v672, %v672
    %681 = vst [vmem:[#allocation2] sm:$0xff] %v673
    %682 = vst [vmem:[#allocation2 + $0x8] sm:$0xff] %v674
    %683 = vst [vmem:[#allocation2 + $0x10] sm:$0xff] %v675
    %vm684 = vcmask 125952
    %685 = vst.msk [vmem:[#allocation2 + $0x18] sm:$0xf] %vm684, %v676
    // Predicated region
    $region22: #{tpu_custom_call.1} parent=1 // pred_check
      _
    $region23: #{tpu_custom_call.1} parent=1 // pred_check_branch
      %687 = sbr.rel (0) target = $region25
    $region24: #{tpu_custom_call.1} parent=1 // pred_region
      %s689 = ssub.s32 448, 448
      %690 = vsyncadd [#allocation3], %s689
      %s692 = sshll.u32 [#allocation2], 4
      %s693 = int_to_ptr.vmem [resolvable:$true] %s692
      %695 = dma.vmem_to_hbm [thread:$0]  %s693, 448, %s5, [#allocation3]
    $region25: #{tpu_custom_call.1} parent=1 // pred_fallthru
      _
    // Predicated region
    $region26: #{tpu_custom_call.1} parent=1 // pred_check
      _
    $region27: #{tpu_custom_call.1} parent=1 // pred_check_branch
      %697 = sbr.rel (0) target = $region29
    $region28: #{tpu_custom_call.1} parent=1 // pred_region
      %698 = dma.done [#allocation3], 448
    $region29: #{tpu_custom_call.1} parent=1 // pred_fallthru
      _
    %699 = vsyncpa [#allocation3], 1

</llo_original>
